<compile_context>
chip_gen: v7x
topology: tpu7x:2x2x1
jax: 0.10.0
libtpu: 0.0.40
codegen_flags: <defaults>
</compile_context>

<pallas_src>
import jax
import jax.numpy as jnp
from jax import lax
from jax.experimental import pallas as pl
from jax.experimental.pallas import tpu as pltpu

BN_EPS = 1e-5


def _vmem_budget_bytes():
    """Chip-aware VMEM budget: ~70% of physical capacity.

    v5e/v6e: 128 MiB physical -> ~89 MiB budget; v7x: 64 MiB -> ~44 MiB.
    Falls back to a conservative 64 MiB capacity if the query is unavailable.
    """
    try:
        cap = int(pltpu.get_tpu_info().vmem_capacity_bytes)
    except Exception:  # pragma: no cover - query not available everywhere
        cap = 64 * 1024 * 1024
    return int(0.70 * cap)


def _make_kernel(apply_bn: bool, use_scratch: bool):
    def body(x_ref, w_ref, p_ref, o_ref, acc_ref):
        k = pl.program_id(1)  # K (reduction) axis is the last grid axis

        @pl.when(k == 0)
        def _init():
            acc_ref[...] = jnp.zeros_like(acc_ref)

        # (N, tk) @ (tk, tc) -> (N, tc).  w is pre-transposed to (F, C) in the
        # wrapper, so no transpose shares vector-extended slots with vmatmul.
        # bf16/f32 operands go straight to the MXU with an f32 accumulator.
        acc_ref[...] += jnp.dot(
            x_ref[...], w_ref[...], preferred_element_type=jnp.float32
        )

        @pl.when(k == pl.num_programs(1) - 1)
        def _finalize():
            y = acc_ref[...].astype(jnp.float32)  # (N, tc)
            if apply_bn:
                gamma = p_ref[0:1, :]
                beta = p_ref[1:2, :]
                inv_n = 1.0 / y.shape[0]
                mean = jnp.sum(y, axis=0, keepdims=True) * inv_n
                centered = y - mean
                # Two-pass variance (no E[y^2]-mean^2 cancellation risk).
                var = jnp.sum(centered * centered, axis=0, keepdims=True) * inv_n
                inv_std = lax.rsqrt(var + BN_EPS)
                out = centered * (inv_std * gamma) + beta
            else:
                out = y + p_ref[0:1, :]  # Linear bias (only on the non-BN path)
            o_ref[...] = out.astype(o_ref.dtype)

    if use_scratch:
        # Non-f32 output: accumulate in a dedicated f32 VMEM scratch.
        def kernel(x_ref, w_ref, p_ref, o_ref, acc_ref):
            body(x_ref, w_ref, p_ref, o_ref, acc_ref)
    else:
        # f32 output: the (N, tc) output block is resident across the K axis,
        # so accumulate directly into it (saves N*tc*4 bytes of VMEM).
        def kernel(x_ref, w_ref, p_ref, o_ref):
            body(x_ref, w_ref, p_ref, o_ref, o_ref)

    return kernel


def feat_bottleneck_forward(x, w, b, gamma, beta, *, bn_type="bn",
                            block_k=None, block_c=None):
    """Fused bottleneck Linear (+ optional training-mode BatchNorm1d).

    x:     (N, feature_dim)
    w:     (bottleneck_dim, feature_dim)   -- native PyTorch layout
    b:     (bottleneck_dim,)
    gamma: (bottleneck_dim,)               -- BN affine scale
    beta:  (bottleneck_dim,)               -- BN affine shift
    """
    N, F = x.shape
    C, F2 = w.shape
    assert F == F2, (F, F2)
    apply_bn = bn_type == "bn"
    out_dtype = x.dtype
    use_scratch = jnp.dtype(out_dtype) != jnp.dtype(jnp.float32)

    # One-time transpose to (F, C): amortized outside the kernel so the RHS of
    # every K-step dot is already in (contract, out) layout.
    w_t = w.T

    # Pack per-column params into a single (2, C) array (one small DMA).
    if apply_bn:
        # Linear bias intentionally omitted: a per-column constant is exactly
        # cancelled by BN's batch-mean subtraction.
        params = jnp.stack([gamma, beta]).astype(jnp.float32)
    else:
        params = jnp.stack([b, jnp.zeros_like(b)]).astype(jnp.float32)

    budget = _vmem_budget_bytes()
    x_item = jnp.dtype(x.dtype).itemsize
    w_item = jnp.dtype(w.dtype).itemsize
    o_item = jnp.dtype(out_dtype).itemsize

    # --- C tile (parallel axis; shards across TensorCores on v7x) ----------
    if block_c is None:
        block_c = C
        for cand in (512, 256, 128):
            if C % cand == 0:
                block_c = cand
                break
        # Prefer >= 2 C tiles (keeps both cores busy) while staying lane-dense.
        while C // block_c < 2 and block_c % 256 == 0:
            block_c //= 2
    assert C % block_c == 0, "block_c must divide bottleneck_dim"

    # --- K tile (reduction axis; prefer multiples of 256 for 256-wide MXUs) -
    def footprint(tk, tc):
        f = (
            2 * N * tk * x_item        # double-buffered x K-slab
            + 2 * tk * tc * w_item     # double-buffered w slab
            + 2 * N * tc * o_item      # double-buffered output block
            + 2 * 2 * tc * 4           # packed params (f32)
        )
        if use_scratch:
            f += N * tc * 4            # f32 accumulator scratch
        return f

    if block_k is None:
        block_k = None
        for cand in (4096, 2048, 1024, 512, 256, 128):
            if F % cand == 0 and footprint(cand, block_c) <= budget:
                block_k = cand
                break
        if block_k is None:
            if F % 128 == 0:
                raise ValueError(
                    "FeatBottleneck Pallas kernel: even a 128-wide K slab "
                    "exceeds the VMEM budget for this (N, bottleneck) tile; "
                    "reduce block_c or add N tiling."
                )
            block_k = F  # F has no 128-divisor: take the whole (small) axis.
    assert F % block_k == 0, "block_k must divide feature_dim"
    if footprint(block_k, block_c) > budget:
        raise ValueError(
            "FeatBottleneck Pallas kernel: working set "
            f"({footprint(block_k, block_c)} B) exceeds VMEM budget ({budget} B)."
        )

    num_c = C // block_c
    num_k = F // block_k
    vmem_limit = int(min(budget, max(2 * footprint(block_k, block_c),
                                     32 * 1024 * 1024)))

    kernel = _make_kernel(apply_bn, use_scratch)
    scratch = [pltpu.VMEM((N, block_c), jnp.float32)] if use_scratch else []

    out = pl.pallas_call(
        kernel,
        out_shape=jax.ShapeDtypeStruct((N, C), out_dtype),
        grid_spec=pltpu.PrefetchScalarGridSpec(
            num_scalar_prefetch=0,
            grid=(num_c, num_k),                                   # K last
            in_specs=[
                pl.BlockSpec((N, block_k), lambda c, k: (0, k)),        # x slab
                pl.BlockSpec((block_k, block_c), lambda c, k: (k, c)),  # w^T slab
                pl.BlockSpec((2, block_c), lambda c, k: (0, c)),        # params
            ],
            out_specs=pl.BlockSpec((N, block_c), lambda c, k: (0, c)),
            scratch_shapes=scratch,
        ),
        compiler_params=pltpu.CompilerParams(
            dimension_semantics=("parallel", "arbitrary"),
            vmem_limit_bytes=vmem_limit,
        ),
    )(x, w_t, params)
    return out


# ----------------------------- references ----------------------------------
def _reference_bn(x, w, b, gamma, beta):
    y = x.astype(jnp.float32) @ w.T.astype(jnp.float32) + b
    mean = jnp.mean(y, axis=0, keepdims=True)
    var = jnp.mean((y - mean) ** 2, axis=0, keepdims=True)
    return (y - mean) / jnp.sqrt(var + BN_EPS) * gamma + beta


def _reference_linear(x, w, b):
    return x.astype(jnp.float32) @ w.T.astype(jnp.float32) + b


if __name__ == "__main__":
    # Shapes consistent with the module: batch=8, feature_dim=256,
    # bottleneck_dim=256 (module default).  block_k=128 on the first test
    # forces 2 K steps so the accumulate/finalize pipeline is exercised;
    # block_c auto-selects 128 -> 2 parallel C tiles.
    N, feature_dim, bottleneck_dim = 8, 256, 256

    key = jax.random.PRNGKey(0)
    kx, kw, kb, kg, kbe = jax.random.split(key, 5)

    x = jax.random.normal(kx, (N, feature_dim), dtype=jnp.float32)
    w = jax.random.normal(kw, (bottleneck_dim, feature_dim), dtype=jnp.float32) * 0.02
    b = jax.random.normal(kb, (bottleneck_dim,), dtype=jnp.float32) * 0.01
    gamma = jnp.ones((bottleneck_dim,), dtype=jnp.float32) + 0.1 * jax.random.normal(
        kg, (bottleneck_dim,), dtype=jnp.float32
    )
    beta = 0.1 * jax.random.normal(kbe, (bottleneck_dim,), dtype=jnp.float32)

    # --- BN path, f32 (accumulates directly into the output block) ---
    out = feat_bottleneck_forward(x, w, b, gamma, beta, bn_type="bn", block_k=128)
    out = jax.block_until_ready(out)
    ref = _reference_bn(x, w, b, gamma, beta)
    assert out.shape == (N, bottleneck_dim)
    err = jnp.max(jnp.abs(out - ref))
    assert jnp.allclose(out, ref, atol=1e-4, rtol=1e-4), f"BN path max abs err {err}"

    # --- Linear-only path, f32 (self.type != 'bn') ---
    out_lin = feat_bottleneck_forward(x, w, b, gamma, beta, bn_type="linear")
    out_lin = jax.block_until_ready(out_lin)
    ref_lin = _reference_linear(x, w, b)
    err_lin = jnp.max(jnp.abs(out_lin - ref_lin))
    assert jnp.allclose(out_lin, ref_lin, atol=1e-4, rtol=1e-4), (
        f"linear path max abs err {err_lin}"
    )

    # --- BN path, bf16 inputs/output (exercises the f32 scratch accumulator) ---
    x_bf = x.astype(jnp.bfloat16)
    w_bf = w.astype(jnp.bfloat16)
    out_bf = feat_bottleneck_forward(x_bf, w_bf, b, gamma, beta, bn_type="bn")
    out_bf = jax.block_until_ready(out_bf)
    ref_bf = _reference_bn(
        x_bf.astype(jnp.float32), w_bf.astype(jnp.float32), b, gamma, beta
    )
    err_bf = jnp.max(jnp.abs(out_bf.astype(jnp.float32) - ref_bf))
    assert jnp.allclose(out_bf.astype(jnp.float32), ref_bf, atol=3e-2, rtol=3e-2), (
        f"bf16 BN path max abs err {err_bf}"
    )

    print("KERNEL_OK")
</pallas_src>

<mosaic_0001>
module attributes {stable_mosaic.version = 11 : i64} {
  func.func @kernel(%arg0: i32, %arg1: i32, %arg2: memref<8x128xf32, #tpu.memory_space<vmem>>, %arg3: memref<128x128xf32, #tpu.memory_space<vmem>>, %arg4: memref<2x128xf32, #tpu.memory_space<vmem>>, %arg5: memref<8x128xf32, #tpu.memory_space<vmem>>) attributes {dimension_semantics = [#tpu.dimension_semantics<parallel>, #tpu.dimension_semantics<arbitrary>], iteration_bounds = array<i64: 2, 2>, scalar_prefetch = 0 : i64, scratch_operands = 0 : i64, tpu.core_type = #tpu.core_type<tc>, window_params = [{transform_indices = @transform_0, window_bounds = array<i64: 8, 128>}, {transform_indices = @transform_1, window_bounds = array<i64: 128, 128>}, {transform_indices = @transform_2, window_bounds = array<i64: 2, 128>}, {transform_indices = @transform_3, window_bounds = array<i64: 8, 128>}]} {
    %c0_i32 = arith.constant 0 : i32
    %0 = arith.cmpi eq, %arg1, %c0_i32 : i32
    %1 = arith.extui %0 : i1 to i32
    %c0_i32_0 = arith.constant 0 : i32
    %2 = arith.cmpi ne, %1, %c0_i32_0 : i32
    scf.if %2 {
      %cst_9 = arith.constant 0.000000e+00 : f32
      %12 = vector.broadcast %cst_9 : f32 to vector<8x128xf32>
      %c0_10 = arith.constant 0 : index
      %c0_11 = arith.constant 0 : index
      %13 = vector.load %arg5[%c0_10, %c0_11] : memref<8x128xf32, #tpu.memory_space<vmem>>, vector<8x128xf32>
      tpu.vector_store %arg5[%c0_10, %c0_11], %12 {strides = array<i32>} : memref<8x128xf32, #tpu.memory_space<vmem>>, vector<8x128xf32>,
    } else {
    }
    %c0 = arith.constant 0 : index
    %c0_1 = arith.constant 0 : index
    %3 = vector.load %arg5[%c0, %c0_1] : memref<8x128xf32, #tpu.memory_space<vmem>>, vector<8x128xf32>
    %c0_2 = arith.constant 0 : index
    %c0_3 = arith.constant 0 : index
    %4 = vector.load %arg2[%c0_2, %c0_3] : memref<8x128xf32, #tpu.memory_space<vmem>>, vector<8x128xf32>
    %c0_4 = arith.constant 0 : index
    %c0_5 = arith.constant 0 : index
    %5 = vector.load %arg3[%c0_4, %c0_5] : memref<128x128xf32, #tpu.memory_space<vmem>>, vector<128x128xf32>
    %cst = arith.constant dense<0.000000e+00> : vector<8x128xf32>
    %6 = tpu.matmul %4, %5, %cst {dimension_numbers = #tpu.dot_dimension_numbers<[1], [0], [0], [1], [0, 0, 1, 1], [], []>} : vector<8x128xf32>, vector<128x128xf32>, vector<8x128xf32> -> vector<8x128xf32>
    %7 = arith.addf %3, %6 : vector<8x128xf32>
    %c0_6 = arith.constant 0 : index
    %c0_7 = arith.constant 0 : index
    %8 = vector.load %arg5[%c0_6, %c0_7] : memref<8x128xf32, #tpu.memory_space<vmem>>, vector<8x128xf32>
    tpu.vector_store %arg5[%c0_6, %c0_7], %7 {strides = array<i32>} : memref<8x128xf32, #tpu.memory_space<vmem>>, vector<8x128xf32>,
    %c1_i32 = arith.constant 1 : i32
    %9 = arith.cmpi eq, %arg1, %c1_i32 : i32
    %10 = arith.extui %9 : i1 to i32
    %c0_i32_8 = arith.constant 0 : i32
    %11 = arith.cmpi ne, %10, %c0_i32_8 : i32
    scf.if %11 {
      %c0_9 = arith.constant 0 : index
      %c0_10 = arith.constant 0 : index
      %12 = vector.load %arg5[%c0_9, %c0_10] : memref<8x128xf32, #tpu.memory_space<vmem>>, vector<8x128xf32>
      %c0_11 = arith.constant 0 : index
      %c0_12 = arith.constant 0 : index
      %13 = vector.load %arg4[%c0_11, %c0_12] : memref<2x128xf32, #tpu.memory_space<vmem>>, vector<1x128xf32>
      %c1 = arith.constant 1 : index
      %c0_13 = arith.constant 0 : index
      %14 = vector.load %arg4[%c1, %c0_13] : memref<2x128xf32, #tpu.memory_space<vmem>>, vector<1x128xf32>
      %cst_14 = arith.constant dense<0.000000e+00> : vector<128xf32>
      %15 = vector.multi_reduction <add>, %12, %cst_14 [0] : vector<8x128xf32> to vector<128xf32>
      %16 = vector.shape_cast %15 : vector<128xf32> to vector<1x128xf32>
      %cst_15 = arith.constant 1.250000e-01 : f32
      %17 = vector.broadcast %cst_15 : f32 to vector<1x128xf32>
      %18 = arith.mulf %16, %17 : vector<1x128xf32>
      %19 = vector.broadcast %18 : vector<1x128xf32> to vector<8x128xf32>
      %20 = arith.subf %12, %19 : vector<8x128xf32>
      %21 = arith.mulf %20, %20 : vector<8x128xf32>
      %cst_16 = arith.constant dense<0.000000e+00> : vector<128xf32>
      %22 = vector.multi_reduction <add>, %21, %cst_16 [0] : vector<8x128xf32> to vector<128xf32>
      %23 = vector.shape_cast %22 : vector<128xf32> to vector<1x128xf32>
      %cst_17 = arith.constant 1.250000e-01 : f32
      %24 = vector.broadcast %cst_17 : f32 to vector<1x128xf32>
      %25 = arith.mulf %23, %24 : vector<1x128xf32>
      %cst_18 = arith.constant 9.99999974E-6 : f32
      %26 = vector.broadcast %cst_18 : f32 to vector<1x128xf32>
      %27 = arith.addf %25, %26 : vector<1x128xf32>
      %28 = math.rsqrt %27 : vector<1x128xf32>
      %29 = arith.mulf %28, %13 : vector<1x128xf32>
      %30 = vector.broadcast %29 : vector<1x128xf32> to vector<8x128xf32>
      %31 = arith.mulf %20, %30 : vector<8x128xf32>
      %32 = vector.broadcast %14 : vector<1x128xf32> to vector<8x128xf32>
      %33 = arith.addf %31, %32 : vector<8x128xf32>
      %c0_19 = arith.constant 0 : index
      %c0_20 = arith.constant 0 : index
      %34 = vector.load %arg5[%c0_19, %c0_20] : memref<8x128xf32, #tpu.memory_space<vmem>>, vector<8x128xf32>
      tpu.vector_store %arg5[%c0_19, %c0_20], %33 {strides = array<i32>} : memref<8x128xf32, #tpu.memory_space<vmem>>, vector<8x128xf32>,
    } else {
    }
    return
  }
  func.func @transform_0(%arg0: i32, %arg1: i32) -> (i32, i32) {
    %c0_i32 = arith.constant 0 : i32
    %c0_i32_0 = arith.constant 0 : i32
    return %c0_i32, %arg1 : i32, i32
  }
  func.func @transform_1(%arg0: i32, %arg1: i32) -> (i32, i32) {
    %c0_i32 = arith.constant 0 : i32
    return %arg1, %arg0 : i32, i32
  }
  func.func @transform_2(%arg0: i32, %arg1: i32) -> (i32, i32) {
    %c0_i32 = arith.constant 0 : i32
    %c0_i32_0 = arith.constant 0 : i32
    return %c0_i32, %arg0 : i32, i32
  }
  func.func @transform_3(%arg0: i32, %arg1: i32) -> (i32, i32) {
    %c0_i32 = arith.constant 0 : i32
    %c0_i32_0 = arith.constant 0 : i32
    return %c0_i32, %arg0 : i32, i32
  }
}

</mosaic_0001>

<llo_original>
// kernel: tpu_custom_call.1
$region0: #{tpu_custom_call.1}
  #allocation0 [shape = 'u32[]', space=smem, size = 0x4, offset = 0x4, fixed_abs, tag = 'smem constant byte address 0x4 - core index']
  #allocation1 [shape = 'u32[144,128]{1,0:T(1,128)}', space=vmem, size = 0x12000, scoped, tag = 'internal scratch']
  %s0 = inlined_call_operand.hbm [shape: f32[8,256], index: 0, kind: input, shape index: {}]
  %s1 = inlined_call_operand.hbm [shape: f32[256,256], index: 1, kind: input, shape index: {}]
  %s2 = inlined_call_operand.vmem [shape: f32[2,256], index: 2, kind: input, shape index: {}]
  %s3 = inlined_call_operand.hbm [shape: f32[8,256], index: 3, kind: output, shape index: {}]
  %s4 = sld [smem:[#allocation0]]
  $region61: #{tpu_custom_call.1} parent=0
    _
  %s6 = ssub.s32 1, %s4
  %s7 = scalar_select 0, %s6, %s4
  $region1: #{tpu_custom_call.1} parent=0
    #allocation2 [shape = 'u8[8192]{0}', space=vmem, size = 0x2000, scoped, tag = 'input window, operand 0']
    #allocation3 [shape = 's32[2]{0}', space=sflag, size = 0x8, scoped, tag = 'scoped memory for tpu_custom_call.1']
    #allocation4 [shape = 's32[2]{0}', space=sflag, size = 0x8, scoped, tag = 'scoped memory for tpu_custom_call.1']
    #allocation5 [shape = 'u8[131072]{0}', space=vmem, size = 0x20000, scoped, tag = 'input window, operand 1']
    #allocation6 [shape = 's32[2]{0}', space=sflag, size = 0x8, scoped, tag = 'scoped memory for tpu_custom_call.1']
    #allocation7 [shape = 'u8[8192]{0}', space=vmem, size = 0x2000, scoped, tag = 'output window, operand 0']
    %8 = vsyncpa [#allocation3], 0
    %s9 = scalar_lea.sflag [#allocation3], 1
    %10 = vsyncpa %s9, 0
    %11 = vsyncpa [#allocation6], 0
    %s12 = scalar_lea.sflag [#allocation6], 1
    %13 = vsyncpa %s12, 0
    %14 = vsyncpa [#allocation4], 0
    %s15 = scalar_lea.sflag [#allocation4], 1
    %16 = vsyncpa %s15, 0
    loop: start=0, step=1, limit=6
    $region2: #{tpu_custom_call.1} parent=1 // loop_pre_header
      _
    $region3: #{tpu_custom_call.1} parent=1 // loop_header
      %s18 = sphi 0, %s22
      %p19 = scmp.ge.s32.totalorder %s18, 6
      %s25 = sphi 0, %s37
      %s26 = sphi 0, %s33
      %s27 = sphi 0, %s25
      %s28 = sphi 0, %s26
      %s29 = sphi 0, %s27
      %s30 = sphi 0, %s28
      %s40 = sphi 0, %s42
      %s43 = sphi 0, %s40
      %s44 = sphi 0, %s43
      %s60 = sphi 0, %s44
      %s68 = sphi 0, %s70
      %s71 = sphi 0, %s68
      %s72 = sphi 0, %s71
      %s88 = sphi 0, %s72
      %s94 = sphi 0, %s96
      %s97 = sphi 0, %s94
      %s98 = sphi 0, %s97
      %s114 = sphi 0, %s98
      %s120 = sphi 0, %s122
      %s123 = sphi 0, %s120
      %s124 = sphi 0, %s123
      %s140 = sphi 0, %s124
    $region4: #{tpu_custom_call.1} parent=1 // loop_header_branch
      %21 = sbr.rel (%p19) target = $region8
    $region5: #{tpu_custom_call.1} parent=1 // loop_body
      %s23 = ssub.s32 %s18, 1
      %s24 = ssub.s32 %s18, 2
      %s31 = sadd.s32 1, %s26
      %p32 = scmp.ge.s32.totalorder %s31, 2
      %s33 = scalar_select %p32, 0, %s31
      %s34 = sadd.s32 1, %s25
      %s35 = scalar_select %p32, %s34, %s25
      %p36 = scmp.ge.s32.totalorder %s35, 2
      %s37 = scalar_select %p36, 0, %s35
      %s38 = ssub.s32 %s26, %s33
      %p39 = scmp.eq.s32.totalorder %s38, 0
      %s41 = sadd.s32 %s40, 1
      %s42 = scalar_select %p39, %s40, %s41
      %p45 = pneg %p39
      %p46 = scmp.eq.s32.totalorder %s18, 3
      %p47 = por %p45, %p46
      %p48 = scmp.ne.s32.totalorder %s40, %s43
      %p49 = scmp.eq.s32.totalorder %s18, 0
      %p50 = por %p48, %p49
      %p51 = scmp.ne.s32.totalorder %s40, %s43
      %p52 = scmp.eq.s32.totalorder %s23, 3
      %p53 = por %p51, %p52
      %p54 = scmp.ne.s32.totalorder %s43, %s44
      %p55 = scmp.eq.s32.totalorder %s23, 0
      %p56 = por %p54, %p55
      %p57 = scmp.ne.s32.totalorder %s43, %s44
      %p58 = scmp.eq.s32.totalorder %s24, 3
      %p59 = por %p57, %p58
      %p61 = scmp.ne.s32.totalorder %s44, %s60
      %p62 = scmp.eq.s32.totalorder %s24, 0
      %p63 = por %p61, %p62
      %s64 = ssub.s32 %s26, %s33
      %s65 = ssub.s32 %s25, %s37
      %s66 = sor.u32 %s64, %s65
      %p67 = scmp.eq.s32.totalorder %s66, 0
      %s69 = sadd.s32 %s68, 1
      %s70 = scalar_select %p67, %s68, %s69
      %p73 = pneg %p67
      %p74 = scmp.eq.s32.totalorder %s18, 3
      %p75 = por %p73, %p74
      %p76 = scmp.ne.s32.totalorder %s68, %s71
      %p77 = scmp.eq.s32.totalorder %s18, 0
      %p78 = por %p76, %p77
      %p79 = scmp.ne.s32.totalorder %s68, %s71
      %p80 = scmp.eq.s32.totalorder %s23, 3
      %p81 = por %p79, %p80
      %p82 = scmp.ne.s32.totalorder %s71, %s72
      %p83 = scmp.eq.s32.totalorder %s23, 0
      %p84 = por %p82, %p83
      %p85 = scmp.ne.s32.totalorder %s71, %s72
      %p86 = scmp.eq.s32.totalorder %s24, 3
      %p87 = por %p85, %p86
      %p89 = scmp.ne.s32.totalorder %s72, %s88
      %p90 = scmp.eq.s32.totalorder %s24, 0
      %p91 = por %p89, %p90
      %s92 = ssub.s32 %s25, %s37
      %p93 = scmp.eq.s32.totalorder %s92, 0
      %s95 = sadd.s32 %s94, 1
      %s96 = scalar_select %p93, %s94, %s95
      %p99 = pneg %p93
      %p100 = scmp.eq.s32.totalorder %s18, 3
      %p101 = por %p99, %p100
      %p102 = scmp.ne.s32.totalorder %s94, %s97
      %p103 = scmp.eq.s32.totalorder %s18, 0
      %p104 = por %p102, %p103
      %p105 = scmp.ne.s32.totalorder %s94, %s97
      %p106 = scmp.eq.s32.totalorder %s23, 3
      %p107 = por %p105, %p106
      %p108 = scmp.ne.s32.totalorder %s97, %s98
      %p109 = scmp.eq.s32.totalorder %s23, 0
      %p110 = por %p108, %p109
      %p111 = scmp.ne.s32.totalorder %s97, %s98
      %p112 = scmp.eq.s32.totalorder %s24, 3
      %p113 = por %p111, %p112
      %p115 = scmp.ne.s32.totalorder %s98, %s114
      %p116 = scmp.eq.s32.totalorder %s24, 0
      %p117 = por %p115, %p116
      %s118 = ssub.s32 %s25, %s37
      %p119 = scmp.eq.s32.totalorder %s118, 0
      %s121 = sadd.s32 %s120, 1
      %s122 = scalar_select %p119, %s120, %s121
      %p125 = pneg %p119
      %p126 = scmp.eq.s32.totalorder %s18, 3
      %p127 = por %p125, %p126
      %p128 = scmp.ne.s32.totalorder %s120, %s123
      %p129 = scmp.eq.s32.totalorder %s18, 0
      %p130 = por %p128, %p129
      %p131 = scmp.ne.s32.totalorder %s120, %s123
      %p132 = scmp.eq.s32.totalorder %s23, 3
      %p133 = por %p131, %p132
      %p134 = scmp.ne.s32.totalorder %s123, %s124
      %p135 = scmp.eq.s32.totalorder %s23, 0
      %p136 = por %p134, %p135
      %p137 = scmp.ne.s32.totalorder %s123, %s124
      %p138 = scmp.eq.s32.totalorder %s24, 3
      %p139 = por %p137, %p138
      %p141 = scmp.ne.s32.totalorder %s124, %s140
      %p142 = scmp.eq.s32.totalorder %s24, 0
      %p143 = por %p141, %p142
      %p144 = scmp.le.s32.totalorder 1, %s18
      %p145 = scmp.lt.s32.totalorder %s18, 5
      %p146 = pnand %p144, %p145
      %p147 = pneg %p146
      // Predicated region
      $region9: #{tpu_custom_call.1} parent=5 // pred_check
        _
      $region10: #{tpu_custom_call.1} parent=5 // pred_check_branch
        %149 = sbr.rel (%p146) target = $region12
      $region11: #{tpu_custom_call.1} parent=5 // pred_region
        %s150 = ssub.s32 %s18, 1
      $region12: #{tpu_custom_call.1} parent=5 // pred_fallthru
        _
      %p151 = scmp.lt.s32.totalorder %s18, 4
      // Predicated region
      $region13: #{tpu_custom_call.1} parent=5 // pred_check
        %p152 = pneg %p151
      $region14: #{tpu_custom_call.1} parent=5 // pred_check_branch
        %154 = sbr.rel (%p152) target = $region16
      $region15: #{tpu_custom_call.1} parent=5 // pred_region
        // Predicated region
        $region17: #{tpu_custom_call.1} parent=15 // pred_check
          %p155 = pneg %p50
        $region18: #{tpu_custom_call.1} parent=15 // pred_check_branch
          %157 = sbr.rel (%p155) target = $region20
        $region19: #{tpu_custom_call.1} parent=15 // pred_region
          %s158 = sand.u32 %s40, 1
          %s159 = scalar_lea.sflag [#allocation3], %s158
          %s160 = sand.u32 %s40, 1
          %s161 = smul.addr %s160, 8
          %s162 = scalar_lea.vmem [#allocation2], %s161
          %s164 = ssub.s32 128, 128
          %165 = vsyncadd %s159, %s164
          %s166 = smul.addr %s26, 128
          %s167 = scalar_lea.hbm %s0, %s166
          %s169 = sshll.u32 %s162, 4
          %s170 = int_to_ptr.vmem [resolvable:$true] %s169
          %172 = dma.hbm_to_vmem [thread:$0]  %s167, 128, %s170, %s159
        $region20: #{tpu_custom_call.1} parent=15 // pred_fallthru
          _
        // Predicated region
        $region21: #{tpu_custom_call.1} parent=15 // pred_check
          %p173 = pneg %p78
        $region22: #{tpu_custom_call.1} parent=15 // pred_check_branch
          %175 = sbr.rel (%p173) target = $region24
        $region23: #{tpu_custom_call.1} parent=15 // pred_region
          %s176 = sand.u32 %s68, 1
          %s177 = scalar_lea.sflag [#allocation6], %s176
          %s178 = sand.u32 %s68, 1
          %s179 = smul.addr %s178, 128
          %s180 = scalar_lea.vmem [#allocation5], %s179
          %s181 = smul.u32 16, %s26
          %s183 = ssub.s32 2048, 2048
          %184 = vsyncadd %s177, %s183
          %s185 = smul.addr %s181, 2
          %s186 = sadd.s32 %s25, %s185
          %s187 = smul.addr %s186, 128
          %s188 = scalar_lea.hbm %s1, %s187
          %s189 = sshll.u32 %s180, 4
          %s190 = int_to_ptr.vmem [resolvable:$true] %s189
          %195 = dma.hbm_to_vmem [thread:$0]  %s188, 2048, %s190, %s177, 256, 128, 8
        $region24: #{tpu_custom_call.1} parent=15 // pred_fallthru
          _
        // Predicated region
        $region25: #{tpu_custom_call.1} parent=15 // pred_check
          %p196 = pneg %p104
        $region26: #{tpu_custom_call.1} parent=15 // pred_check_branch
          %198 = sbr.rel (%p196) target = $region28
        $region27: #{tpu_custom_call.1} parent=15 // pred_region
          %p199 = scmp.lt.s32.totalorder %s25, 1
          %s200 = scalar_select %p199, %s25, 1
          %s201 = smul.addr %s200, 2
          %s202 = scalar_lea.vmem %s2, %s201
        $region28: #{tpu_custom_call.1} parent=15 // pred_fallthru
          _
      $region16: #{tpu_custom_call.1} parent=5 // pred_fallthru
        _
      %p203 = scmp.le.s32.totalorder 1, %s18
      %p204 = scmp.lt.s32.totalorder %s18, 5
      %p205 = pnand %p203, %p204
      %p206 = pneg %p205
      // Predicated region
      $region29: #{tpu_custom_call.1} parent=5 // pred_check
        _
      $region30: #{tpu_custom_call.1} parent=5 // pred_check_branch
        %208 = sbr.rel (%p205) target = $region32
      $region31: #{tpu_custom_call.1} parent=5 // pred_region
        %s209 = ssub.s32 %s18, 1
        %s210 = sand.u32 %s43, 1
        %s211 = scalar_lea.sflag [#allocation3], %s210
        %s212 = sand.u32 %s43, 1
        %s213 = smul.addr %s212, 8
        %s214 = scalar_lea.vmem [#allocation2], %s213
        // Predicated region
        $region33: #{tpu_custom_call.1} parent=31 // pred_check
          %p215 = pneg %p56
        $region34: #{tpu_custom_call.1} parent=31 // pred_check_branch
          %217 = sbr.rel (%p215) target = $region36
        $region35: #{tpu_custom_call.1} parent=31 // pred_region
          %218 = dma.done %s211, 128
        $region36: #{tpu_custom_call.1} parent=31 // pred_fallthru
          _
        %s219 = sand.u32 %s71, 1
        %s220 = scalar_lea.sflag [#allocation6], %s219
        %s221 = sand.u32 %s71, 1
        %s222 = smul.addr %s221, 128
        %s223 = scalar_lea.vmem [#allocation5], %s222
        // Predicated region
        $region37: #{tpu_custom_call.1} parent=31 // pred_check
          %p224 = pneg %p84
        $region38: #{tpu_custom_call.1} parent=31 // pred_check_branch
          %226 = sbr.rel (%p224) target = $region40
        $region39: #{tpu_custom_call.1} parent=31 // pred_region
          %227 = dma.done %s220, 2048
        $region40: #{tpu_custom_call.1} parent=31 // pred_fallthru
          _
        %s228 = sand.u32 %s43, 1
        %s229 = scalar_lea.sflag [#allocation3], %s228
        %s230 = sand.u32 %s43, 1
        %s231 = smul.addr %s230, 8
        %s232 = scalar_lea.vmem [#allocation2], %s231
        %p233 = pneg %p56
        %p234 = pneg %p53
        %s235 = sand.u32 %s71, 1
        %s236 = scalar_lea.sflag [#allocation6], %s235
        %s237 = sand.u32 %s71, 1
        %s238 = smul.addr %s237, 128
        %s239 = scalar_lea.vmem [#allocation5], %s238
        %p240 = pneg %p84
        %p241 = pneg %p81
        %p242 = scmp.lt.s32.totalorder %s27, 1
        %s243 = scalar_select %p242, %s27, 1
        %s244 = smul.addr %s243, 2
        %s245 = scalar_lea.vmem %s2, %s244
        %p246 = pneg %p110
        %p247 = pneg %p107
        %p248 = pneg %p136
        %p249 = pneg %p133
        %s250 = sand.u32 %s123, 1
        %s251 = scalar_lea.sflag [#allocation4], %s250
        %s252 = sand.u32 %s123, 1
        %s253 = smul.addr %s252, 8
        %s254 = scalar_lea.vmem [#allocation7], %s253
        %s255 = smul.u32 16, %s28
        %p256 = scmp.lt.s32.totalorder %s27, 1
        %s257 = scalar_select %p256, %s27, 1
        %s258 = smul.addr %s257, 2
        %s259 = scalar_lea.vmem %s2, %s258
        %p260 = scmp.eq.s32.totalorder %s28, 0
        // Predicated region
        $region41: #{tpu_custom_call.1} parent=31 // pred_check
          %p261 = pneg %p260
        $region42: #{tpu_custom_call.1} parent=31 // pred_check_branch
          %263 = sbr.rel (%p261) target = $region44
        $region43: #{tpu_custom_call.1} parent=31 // pred_region
          %264 = vst [vmem:[%s254] sm:$0xff] 0.0
        $region44: #{tpu_custom_call.1} parent=31 // pred_fallthru
          _
        %v265 = vld [vmem:[%s254] sm:$0xff]
        %v266 = vld [vmem:[%s214] sm:$0xff]
        %v267 = vld [vmem:[%s223] sm:$0xff]
        %v268 = vld [vmem:[%s223 + $0x8] sm:$0xff]
        %v269 = vld [vmem:[%s223 + $0x10] sm:$0xff]
        %v270 = vld [vmem:[%s223 + $0x18] sm:$0xff]
        %v271 = vld [vmem:[%s223 + $0x20] sm:$0xff]
        %v272 = vld [vmem:[%s223 + $0x28] sm:$0xff]
        %v273 = vld [vmem:[%s223 + $0x30] sm:$0xff]
        %v274 = vld [vmem:[%s223 + $0x38] sm:$0xff]
        %v275 = vld [vmem:[%s223 + $0x40] sm:$0xff]
        %v276 = vld [vmem:[%s223 + $0x48] sm:$0xff]
        %v277 = vld [vmem:[%s223 + $0x50] sm:$0xff]
        %v278 = vld [vmem:[%s223 + $0x58] sm:$0xff]
        %v279 = vld [vmem:[%s223 + $0x60] sm:$0xff]
        %v280 = vld [vmem:[%s223 + $0x68] sm:$0xff]
        %v281 = vld [vmem:[%s223 + $0x70] sm:$0xff]
        %v282 = vld [vmem:[%s223 + $0x78] sm:$0xff]
        %283 = vmatprep.subr.mxu0 0.0
        %284 = vmatpush1.msra.mxu0 %v267
        %285 = vmatprep.subr.mxu0 0.0
        %286 = vmatpush1.msra.mxu0 %v268
        %287 = vmatprep.subr.mxu0 0.0
        %288 = vmatpush1.msra.mxu0 %v269
        %289 = vmatprep.subr.mxu0 0.0
        %290 = vmatpush1.msra.mxu0 %v270
        %291 = vmatprep.subr.mxu0 0.0
        %292 = vmatpush1.msra.mxu0 %v271
        %293 = vmatprep.subr.mxu0 0.0
        %294 = vmatpush1.msra.mxu0 %v272
        %295 = vmatprep.subr.mxu0 0.0
        %296 = vmatpush1.msra.mxu0 %v273
        %297 = vmatprep.subr.mxu0 0.0
        %298 = vmatpush1.msra.mxu0 %v274
        %299 = vmatprep.subr.mxu0 0.0
        %300 = vmatpush1.msra.mxu0 %v275
        %301 = vmatprep.subr.mxu0 0.0
        %302 = vmatpush1.msra.mxu0 %v276
        %303 = vmatprep.subr.mxu0 0.0
        %304 = vmatpush1.msra.mxu0 %v277
        %305 = vmatprep.subr.mxu0 0.0
        %306 = vmatpush1.msra.mxu0 %v278
        %307 = vmatprep.subr.mxu0 0.0
        %308 = vmatpush1.msra.mxu0 %v279
        %309 = vmatprep.subr.mxu0 0.0
        %310 = vmatpush1.msra.mxu0 %v280
        %311 = vmatprep.subr.mxu0 0.0
        %312 = vmatpush1.msra.mxu0 %v281
        %313 = vmatprep.subr.mxu0 0.0
        %314 = vmatpush1.msra.mxu0 %v282
        %315 = vmatprep.subr.mxu0 0.0
        %316 = vmatpush1.msra.mxu0 0.0
        %317 = vmatprep.subr.mxu0 0.0
        %318 = vmatpush1.msra.mxu0 0.0
        %319 = vmatprep.subr.mxu0 0.0
        %320 = vmatpush1.msra.mxu0 0.0
        %321 = vmatprep.subr.mxu0 0.0
        %322 = vmatpush1.msra.mxu0 0.0
        %323 = vmatprep.subr.mxu0 0.0
        %324 = vmatpush1.msra.mxu0 0.0
        %325 = vmatprep.subr.mxu0 0.0
        %326 = vmatpush1.msra.mxu0 0.0
        %327 = vmatprep.subr.mxu0 0.0
        %328 = vmatpush1.msra.mxu0 0.0
        %329 = vmatprep.subr.mxu0 0.0
        %330 = vmatpush1.msra.mxu0 0.0
        %331 = vmatprep.subr.mxu0 0.0
        %332 = vmatpush1.msra.mxu0 0.0
        %333 = vmatprep.subr.mxu0 0.0
        %334 = vmatpush1.msra.mxu0 0.0
        %335 = vmatprep.subr.mxu0 0.0
        %336 = vmatpush1.msra.mxu0 0.0
        %337 = vmatprep.subr.mxu0 0.0
        %338 = vmatpush1.msra.mxu0 0.0
        %339 = vmatprep.subr.mxu0 0.0
        %340 = vmatpush1.msra.mxu0 0.0
        %341 = vmatprep.subr.mxu0 0.0
        %342 = vmatpush1.msra.mxu0 0.0
        %343 = vmatprep.subr.mxu0 0.0
        %344 = vmatpush1.msra.mxu0 0.0
        %345 = vmatprep.subr.mxu0 0.0
        %346 = vmatpush1.msra.mxu0 0.0
        %347 = vmatprep.mubr.f32.mxu0 0.0
        %348 = vmatmul.mubr.f32.gmra.mrb[0].mxu0 %v266
        %v349 = vpop.f32.mrb[0].mxu0
        %v350 = vadd.f32 0.0, %v349
        %v351 = vpop.f32.mrb[0].mxu0
        %352 = vdwg.mxu0
        %v353 = vadd.f32 %v265, %v350
        %354 = vst [vmem:[%s254] sm:$0xff] %v353
        %p355 = scmp.eq.s32.totalorder %s28, 1
        // Predicated region
        $region45: #{tpu_custom_call.1} parent=31 // pred_check
          %p356 = pneg %p355
        $region46: #{tpu_custom_call.1} parent=31 // pred_check_branch
          %358 = sbr.rel (%p356) target = $region48
        $region47: #{tpu_custom_call.1} parent=31 // pred_region
          %v359 = vld [vmem:[%s254] sm:$0xff]
          %v360 = vld [vmem:[%s259] sm:$0x1]
          %v361 = vld [vmem:[%s259 + $0x1] sm:$0x1]
          %v362 = vrot.slane %v359, 4
          %v363 = vadd.f32 %v359, %v362
          %v364 = vrot.slane %v363, 2
          %v365 = vadd.f32 %v363, %v364
          %v366 = vrot.slane %v365, 1
          %v367 = vadd.f32 %v365, %v366
          %v368 = vmul.f32 %v367, 0.125
          %v369 = vsub.f32 %v359, %v368
          %v370 = vmul.f32 %v369, %v369
          %v371 = vrot.slane %v370, 4
          %v372 = vadd.f32 %v370, %v371
          %v373 = vrot.slane %v372, 2
          %v374 = vadd.f32 %v372, %v373
          %v375 = vrot.slane %v374, 1
          %v376 = vadd.f32 %v374, %v375
          %v377 = vmul.f32 %v376, 0.125
          %v378 = vadd.f32 %v377, 1e-05
          %v379 = vrsqrt.pop %v378
          %v380 = vmul.f32 %v379, %v360
          %v381 = vlaneseq
          %v382 = vshrl.u32 %v381, 7
          %v383 = vsub.s32 0, %v382
          %v384 = vrot.slane %v380, %v383
          %v385 = vmul.f32 %v369, %v384
          %v386 = vlaneseq
          %v387 = vshrl.u32 %v386, 7
          %v388 = vsub.s32 0, %v387
          %v389 = vrot.slane %v361, %v388
          %v390 = vadd.f32 %v385, %v389
          %391 = vst [vmem:[%s254] sm:$0xff] %v390
        $region48: #{tpu_custom_call.1} parent=31 // pred_fallthru
          _
        %s392 = sand.u32 %s123, 1
        %s393 = scalar_lea.sflag [#allocation4], %s392
        %s394 = sand.u32 %s123, 1
        %s395 = smul.addr %s394, 8
        %s396 = scalar_lea.vmem [#allocation7], %s395
        // Predicated region
        $region49: #{tpu_custom_call.1} parent=31 // pred_check
          %p397 = pneg %p133
        $region50: #{tpu_custom_call.1} parent=31 // pred_check_branch
          %399 = sbr.rel (%p397) target = $region52
        $region51: #{tpu_custom_call.1} parent=31 // pred_region
          %s401 = ssub.s32 128, 128
          %402 = vsyncadd %s393, %s401
          %s403 = smul.addr %s27, 128
          %s404 = scalar_lea.hbm %s3, %s403
          %s406 = sshll.u32 %s396, 4
          %s407 = int_to_ptr.vmem [resolvable:$true] %s406
          %409 = dma.vmem_to_hbm [thread:$0]  %s407, 128, %s404, %s393
        $region52: #{tpu_custom_call.1} parent=31 // pred_fallthru
          _
      $region32: #{tpu_custom_call.1} parent=5 // pred_fallthru
        _
      %p410 = scmp.le.s32.totalorder 2, %s18
      // Predicated region
      $region53: #{tpu_custom_call.1} parent=5 // pred_check
        %p411 = pneg %p410
      $region54: #{tpu_custom_call.1} parent=5 // pred_check_branch
        %413 = sbr.rel (%p411) target = $region56
      $region55: #{tpu_custom_call.1} parent=5 // pred_region
        %s414 = ssub.s32 %s18, 2
        // Predicated region
        $region57: #{tpu_custom_call.1} parent=55 // pred_check
          %p415 = pneg %p139
        $region58: #{tpu_custom_call.1} parent=55 // pred_check_branch
          %417 = sbr.rel (%p415) target = $region60
        $region59: #{tpu_custom_call.1} parent=55 // pred_region
          %s418 = sand.u32 %s124, 1
          %s419 = scalar_lea.sflag [#allocation4], %s418
          %s420 = sand.u32 %s124, 1
          %s421 = smul.addr %s420, 8
          %s422 = scalar_lea.vmem [#allocation7], %s421
          %423 = dma.done %s419, 128
        $region60: #{tpu_custom_call.1} parent=55 // pred_fallthru
          _
      $region56: #{tpu_custom_call.1} parent=5 // pred_fallthru
        _
    $region6: #{tpu_custom_call.1} parent=1 // loop_footer
      %s22 = sadd.s32 1, %s18
    $region7: #{tpu_custom_call.1} parent=1 // loop_footer_branch
      %17 = sbr.rel target = $region3
    $region8: #{tpu_custom_call.1} parent=1 // loop_exit
      _
    %424 = vsyncpa [#allocation3], 1
    %s425 = scalar_lea.sflag [#allocation3], 1
    %426 = vsyncpa %s425, 1
    %427 = vsyncpa [#allocation6], 1
    %s428 = scalar_lea.sflag [#allocation6], 1
    %429 = vsyncpa %s428, 1
    %430 = vsyncpa [#allocation4], 1
    %s431 = scalar_lea.sflag [#allocation4], 1
    %432 = vsyncpa %s431, 1

</llo_original>
